<compile_context>
chip_gen: v5e
topology: v5e:2x2
jax: 0.10.0
libtpu: 0.0.40
codegen_flags: <defaults>
</compile_context>

<pallas_src>
import functools

import jax
import jax.numpy as jnp
from jax import lax
from jax.experimental import pallas as pl
from jax.experimental.pallas import tpu as pltpu


def _round_down_to(x, m):
    return max(m, (x // m) * m)


def fasttext_kernel(ids_ref, table_ref, w_ref, b_ref, out_ref, *, seq_len, vocab):
    """Fused embedding-mean + folded FC + softmax on one batch tile.

    ids_ref:   (tb, L)  int32  token ids
    table_ref: (V, E)   bf16   embedding table (pinned in VMEM)
    w_ref:     (E, C)   bf16   folded fc1@fc2 weight (pinned)
    b_ref:     (1, C)   f32    folded bias (pinned)
    out_ref:   (tb, C)  f32    softmax probabilities
    """
    tb = ids_ref.shape[0]
    ids = ids_ref[...]                                            # (tb, L) int32

    # Bag-of-words counts (tb, V): counts[b, v] = #(ids[b, :] == v) / L.
    # Static unroll over the short sequence axis; pure VPU work with huge slack.
    vocab_iota = lax.broadcasted_iota(jnp.int32, (tb, vocab), 1)
    counts = jnp.zeros((tb, vocab), jnp.float32)
    for l in range(seq_len):
        counts = counts + (ids[:, l:l + 1] == vocab_iota).astype(jnp.float32)
    counts = counts * (1.0 / seq_len)                             # sequence mean

    # Mean-pooled embedding via MXU: (tb, V) @ (V, E). counts values are small
    # multiples of 1/L, so the bf16 cast is (near-)exact; accumulate in f32.
    x = jnp.dot(counts.astype(table_ref.dtype), table_ref[...],
                preferred_element_type=jnp.float32)               # (tb, E) f32

    # Folded fc1+fc2 and bias (exact linear fold done in the wrapper).
    logits = jnp.dot(x.astype(w_ref.dtype), w_ref[...],
                     preferred_element_type=jnp.float32) + b_ref[...]

    # Numerically-stable softmax; exact divide (free under the DMA-bound path).
    m = jnp.max(logits, axis=-1, keepdims=True)
    e = jnp.exp(logits - m)
    out_ref[...] = e / jnp.sum(e, axis=-1, keepdims=True)


def _pick_batch_tile(B, L, V, E, C, block_b):
    """Batch tile: big (amortize ~0.35us/step), VMEM-bounded, >=2 steps for v7x."""
    if B <= 8:
        return B                          # single tile; tb == full B is a legal block
    tb = min(block_b, B)
    # Rough per-row VMEM bytes: double-buffered ids/out tiles + f32 in-kernel
    # intermediates (counts, x, logits, exp).  Keep well under the 32 MiB
    # default scoped limit (and v7x's 64 MiB physical VMEM).
    bytes_per_row = 4 * (2 * L + 2 * C + V + E + 3 * C)
    vmem_budget = 16 * 1024 * 1024
    tb = min(tb, vmem_budget // bytes_per_row)
    # At least 2 grid steps so the "parallel" batch axis can be split across
    # v7x's two TensorCores (otherwise one core idles).
    tb = min(tb, -(-B // 2))
    return _round_down_to(tb, 8)          # sublane multiple


def fasttext_forward(token_ids, emb_table, w1, b1, w2, b2, *, block_b=4096):
    """token_ids: (B, L) int32. Returns softmax probabilities (B, C) in f32."""
    B, L = token_ids.shape
    V, E = emb_table.shape
    C = w2.shape[1]

    # ---- exact parameter fold (no nonlinearity between fc1 and fc2), in f32 --
    w12 = w1.astype(jnp.float32) @ w2.astype(jnp.float32)            # (E, C)
    b12 = b1.astype(jnp.float32) @ w2.astype(jnp.float32) + b2.astype(jnp.float32)
    # bf16 transport for the pinned MXU operands; bias stays f32.
    table = emb_table.astype(jnp.bfloat16)                           # (V, E)
    w12 = w12.astype(jnp.bfloat16)                                   # (E, C)
    b12 = b12.reshape(1, C).astype(jnp.float32)                      # (1, C)

    # Whole-table-in-VMEM path: valid while the table comfortably fits VMEM.
    # TODO(synk): for large vocabularies (table >> VMEM) switch to a
    # scalar-prefetch page table + manual DMA gather of the needed rows.
    if V * E * table.dtype.itemsize > 8 * 1024 * 1024:
        raise NotImplementedError("embedding table too large for the VMEM-resident path")

    tb = _pick_batch_tile(B, L, V, E, C, block_b)
    grid = (pl.cdiv(B, tb),)

    kernel = functools.partial(fasttext_kernel, seq_len=L, vocab=V)

    cost = pl.CostEstimate(
        flops=2 * B * (V * E + E * C),
        transcendentals=B * C,
        bytes_accessed=(B * L * 4 + B * C * 4
                        + V * E * table.dtype.itemsize
                        + E * C * w12.dtype.itemsize + C * 4),
    )

    out = pl.pallas_call(
        kernel,
        out_shape=jax.ShapeDtypeStruct((B, C), jnp.float32),
        grid=grid,
        in_specs=[
            # token ids march over the batch axis (double-buffered stream).
            pl.BlockSpec((tb, L), lambda i: (i, 0)),
            # Pinned operands: constant index_map -> single-buffer them.
            pl.BlockSpec((V, E), lambda i: (0, 0), pipeline_mode=pl.Buffered(1)),
            pl.BlockSpec((E, C), lambda i: (0, 0), pipeline_mode=pl.Buffered(1)),
            pl.BlockSpec((1, C), lambda i: (0, 0), pipeline_mode=pl.Buffered(1)),
        ],
        # Unpadded (tb, C) store: C equals the full last dim, so the block is
        # legal; 16x fewer writeback bytes than a 128-lane-padded f32 store.
        out_specs=pl.BlockSpec((tb, C), lambda i: (i, 0)),
        compiler_params=pltpu.CompilerParams(
            dimension_semantics=("parallel",),        # shard batch over TCs
        ),
        cost_estimate=cost,
    )(token_ids.astype(jnp.int32), table, w12, b12)

    return out


if __name__ == "__main__":
    # Small, deterministic config consistent with the module's __init__.
    batch = 2
    seq_len = 8
    vocab_size = 50
    embedding_dim = 32
    hidden_size = 32
    class_num = 8

    key = jax.random.PRNGKey(0)
    k_emb, k_w1, k_b1, k_w2, k_b2, k_x = jax.random.split(key, 6)

    emb_table = jax.random.normal(k_emb, (vocab_size, embedding_dim),
                                  dtype=jnp.float32) * 0.1
    # nn.Linear stores weight as (out, in); we keep (in, out) for x @ W.
    w1 = jax.random.normal(k_w1, (embedding_dim, hidden_size),
                           dtype=jnp.float32) * 0.1
    b1 = jax.random.normal(k_b1, (hidden_size,), dtype=jnp.float32) * 0.1
    w2 = jax.random.normal(k_w2, (hidden_size, class_num),
                           dtype=jnp.float32) * 0.1
    b2 = jax.random.normal(k_b2, (class_num,), dtype=jnp.float32) * 0.1

    token_ids = jax.random.randint(k_x, (batch, seq_len), 0, vocab_size,
                                   dtype=jnp.int32)

    out = fasttext_forward(token_ids, emb_table, w1, b1, w2, b2)
    out = jax.block_until_ready(out)

    # Pure-JAX reference: the original (unfolded) module math in f32.
    emb_ref = jnp.take(emb_table, token_ids, axis=0).mean(axis=1)
    logits_ref = (emb_ref @ w1 + b1) @ w2 + b2
    ref = jax.nn.softmax(logits_ref, axis=-1)

    assert out.shape == (batch, class_num)
    # Tolerance covers the exact fc1@fc2 fold (rounding order) and bf16
    # transport of the embedding table / folded weight.
    assert jnp.allclose(out, ref, atol=3e-3, rtol=3e-3), float(jnp.abs(out - ref).max())
    # Exact divide in the softmax -> rows sum to 1 to f32 precision.
    assert jnp.allclose(jnp.sum(out, axis=-1), 1.0, atol=1e-3)

    print("KERNEL_OK")
</pallas_src>

<mosaic_0001>
module attributes {stable_mosaic.version = 11 : i64} {
  func.func @fasttext_kernel(%arg0: i32, %arg1: memref<2x8xi32, #tpu.memory_space<vmem>>, %arg2: memref<50x32xbf16, #tpu.memory_space<vmem>>, %arg3: memref<32x8xbf16, #tpu.memory_space<vmem>>, %arg4: memref<1x8xf32, #tpu.memory_space<vmem>>, %arg5: memref<2x8xf32, #tpu.memory_space<vmem>>) attributes {dimension_semantics = [#tpu.dimension_semantics<parallel>], iteration_bounds = array<i64: 1>, scalar_prefetch = 0 : i64, scratch_operands = 0 : i64, tpu.core_type = #tpu.core_type<tc>, window_params = [{transform_indices = @transform_0, window_bounds = array<i64: 2, 8>}, {pipeline_mode = #tpu.pipeline_mode<synchronous>, transform_indices = @transform_1, window_bounds = array<i64: 50, 32>}, {pipeline_mode = #tpu.pipeline_mode<synchronous>, transform_indices = @transform_2, window_bounds = array<i64: 32, 8>}, {pipeline_mode = #tpu.pipeline_mode<synchronous>, transform_indices = @transform_3, window_bounds = array<i64: 1, 8>}, {transform_indices = @transform_4, window_bounds = array<i64: 2, 8>}]} {
    %c0 = arith.constant 0 : index
    %c0_0 = arith.constant 0 : index
    %0 = vector.load %arg1[%c0, %c0_0] : memref<2x8xi32, #tpu.memory_space<vmem>>, vector<2x8xi32>
    %1 = tpu.iota {dimensions = array<i32: 1>} : vector<2x50xi32>
    %cst = arith.constant 0.000000e+00 : f32
    %2 = vector.broadcast %cst : f32 to vector<2x50xf32>
    %3 = vector.extract_strided_slice %0 {offsets = [0, 0], sizes = [2, 1], strides = [1, 1]} : vector<2x8xi32> to vector<2x1xi32>
    %4 = vector.broadcast %3 : vector<2x1xi32> to vector<2x50xi32>
    %5 = arith.cmpi eq, %4, %1 : vector<2x50xi32>
    %6 = arith.extui %5 : vector<2x50xi1> to vector<2x50xi32>
    %7 = arith.sitofp %6 : vector<2x50xi32> to vector<2x50xf32>
    %8 = arith.addf %2, %7 : vector<2x50xf32>
    %9 = vector.extract_strided_slice %0 {offsets = [0, 1], sizes = [2, 1], strides = [1, 1]} : vector<2x8xi32> to vector<2x1xi32>
    %10 = vector.broadcast %9 : vector<2x1xi32> to vector<2x50xi32>
    %11 = arith.cmpi eq, %10, %1 : vector<2x50xi32>
    %12 = arith.extui %11 : vector<2x50xi1> to vector<2x50xi32>
    %13 = arith.sitofp %12 : vector<2x50xi32> to vector<2x50xf32>
    %14 = arith.addf %8, %13 : vector<2x50xf32>
    %15 = vector.extract_strided_slice %0 {offsets = [0, 2], sizes = [2, 1], strides = [1, 1]} : vector<2x8xi32> to vector<2x1xi32>
    %16 = vector.broadcast %15 : vector<2x1xi32> to vector<2x50xi32>
    %17 = arith.cmpi eq, %16, %1 : vector<2x50xi32>
    %18 = arith.extui %17 : vector<2x50xi1> to vector<2x50xi32>
    %19 = arith.sitofp %18 : vector<2x50xi32> to vector<2x50xf32>
    %20 = arith.addf %14, %19 : vector<2x50xf32>
    %21 = vector.extract_strided_slice %0 {offsets = [0, 3], sizes = [2, 1], strides = [1, 1]} : vector<2x8xi32> to vector<2x1xi32>
    %22 = vector.broadcast %21 : vector<2x1xi32> to vector<2x50xi32>
    %23 = arith.cmpi eq, %22, %1 : vector<2x50xi32>
    %24 = arith.extui %23 : vector<2x50xi1> to vector<2x50xi32>
    %25 = arith.sitofp %24 : vector<2x50xi32> to vector<2x50xf32>
    %26 = arith.addf %20, %25 : vector<2x50xf32>
    %27 = vector.extract_strided_slice %0 {offsets = [0, 4], sizes = [2, 1], strides = [1, 1]} : vector<2x8xi32> to vector<2x1xi32>
    %28 = vector.broadcast %27 : vector<2x1xi32> to vector<2x50xi32>
    %29 = arith.cmpi eq, %28, %1 : vector<2x50xi32>
    %30 = arith.extui %29 : vector<2x50xi1> to vector<2x50xi32>
    %31 = arith.sitofp %30 : vector<2x50xi32> to vector<2x50xf32>
    %32 = arith.addf %26, %31 : vector<2x50xf32>
    %33 = vector.extract_strided_slice %0 {offsets = [0, 5], sizes = [2, 1], strides = [1, 1]} : vector<2x8xi32> to vector<2x1xi32>
    %34 = vector.broadcast %33 : vector<2x1xi32> to vector<2x50xi32>
    %35 = arith.cmpi eq, %34, %1 : vector<2x50xi32>
    %36 = arith.extui %35 : vector<2x50xi1> to vector<2x50xi32>
    %37 = arith.sitofp %36 : vector<2x50xi32> to vector<2x50xf32>
    %38 = arith.addf %32, %37 : vector<2x50xf32>
    %39 = vector.extract_strided_slice %0 {offsets = [0, 6], sizes = [2, 1], strides = [1, 1]} : vector<2x8xi32> to vector<2x1xi32>
    %40 = vector.broadcast %39 : vector<2x1xi32> to vector<2x50xi32>
    %41 = arith.cmpi eq, %40, %1 : vector<2x50xi32>
    %42 = arith.extui %41 : vector<2x50xi1> to vector<2x50xi32>
    %43 = arith.sitofp %42 : vector<2x50xi32> to vector<2x50xf32>
    %44 = arith.addf %38, %43 : vector<2x50xf32>
    %45 = vector.extract_strided_slice %0 {offsets = [0, 7], sizes = [2, 1], strides = [1, 1]} : vector<2x8xi32> to vector<2x1xi32>
    %46 = vector.broadcast %45 : vector<2x1xi32> to vector<2x50xi32>
    %47 = arith.cmpi eq, %46, %1 : vector<2x50xi32>
    %48 = arith.extui %47 : vector<2x50xi1> to vector<2x50xi32>
    %49 = arith.sitofp %48 : vector<2x50xi32> to vector<2x50xf32>
    %50 = arith.addf %44, %49 : vector<2x50xf32>
    %cst_1 = arith.constant 1.250000e-01 : f32
    %51 = vector.broadcast %cst_1 : f32 to vector<2x50xf32>
    %52 = arith.mulf %50, %51 : vector<2x50xf32>
    %53 = arith.truncf %52 : vector<2x50xf32> to vector<2x50xbf16>
    %c0_2 = arith.constant 0 : index
    %c0_3 = arith.constant 0 : index
    %54 = vector.load %arg2[%c0_2, %c0_3] : memref<50x32xbf16, #tpu.memory_space<vmem>>, vector<50x32xbf16>
    %cst_4 = arith.constant dense<0.000000e+00> : vector<2x32xf32>
    %55 = tpu.matmul %53, %54, %cst_4 {dimension_numbers = #tpu.dot_dimension_numbers<[1], [0], [0], [1], [0, 0, 1, 1], [], []>} : vector<2x50xbf16>, vector<50x32xbf16>, vector<2x32xf32> -> vector<2x32xf32>
    %56 = arith.truncf %55 : vector<2x32xf32> to vector<2x32xbf16>
    %c0_5 = arith.constant 0 : index
    %c0_6 = arith.constant 0 : index
    %57 = vector.load %arg3[%c0_5, %c0_6] : memref<32x8xbf16, #tpu.memory_space<vmem>>, vector<32x8xbf16>
    %cst_7 = arith.constant dense<0.000000e+00> : vector<2x8xf32>
    %58 = tpu.matmul %56, %57, %cst_7 {dimension_numbers = #tpu.dot_dimension_numbers<[1], [0], [0], [1], [0, 0, 1, 1], [], []>} : vector<2x32xbf16>, vector<32x8xbf16>, vector<2x8xf32> -> vector<2x8xf32>
    %c0_8 = arith.constant 0 : index
    %c0_9 = arith.constant 0 : index
    %59 = vector.load %arg4[%c0_8, %c0_9] : memref<1x8xf32, #tpu.memory_space<vmem>>, vector<1x8xf32>
    %60 = vector.broadcast %59 : vector<1x8xf32> to vector<2x8xf32>
    %61 = arith.addf %58, %60 : vector<2x8xf32>
    %cst_10 = arith.constant dense<0xFF800000> : vector<2xf32>
    %62 = vector.multi_reduction <maximumf>, %61, %cst_10 [1] : vector<2x8xf32> to vector<2xf32>
    %63 = vector.shape_cast %62 : vector<2xf32> to vector<2x1xf32>
    %64 = vector.broadcast %63 : vector<2x1xf32> to vector<2x8xf32>
    %65 = arith.subf %61, %64 : vector<2x8xf32>
    %66 = math.exp %65 : vector<2x8xf32>
    %cst_11 = arith.constant dense<0.000000e+00> : vector<2xf32>
    %67 = vector.multi_reduction <add>, %66, %cst_11 [1] : vector<2x8xf32> to vector<2xf32>
    %68 = vector.shape_cast %67 : vector<2xf32> to vector<2x1xf32>
    %69 = vector.broadcast %68 : vector<2x1xf32> to vector<2x8xf32>
    %70 = arith.divf %66, %69 : vector<2x8xf32>
    %c0_12 = arith.constant 0 : index
    %c0_13 = arith.constant 0 : index
    %71 = vector.load %arg5[%c0_12, %c0_13] : memref<2x8xf32, #tpu.memory_space<vmem>>, vector<2x8xf32>
    tpu.vector_store %arg5[%c0_12, %c0_13], %70 {strides = array<i32>} : memref<2x8xf32, #tpu.memory_space<vmem>>, vector<2x8xf32>,
    return
  }
  func.func @transform_0(%arg0: i32) -> (i32, i32) {
    %c0_i32 = arith.constant 0 : i32
    %c0_i32_0 = arith.constant 0 : i32
    return %arg0, %c0_i32 : i32, i32
  }
  func.func @transform_1(%arg0: i32) -> (i32, i32) {
    %c0_i32 = arith.constant 0 : i32
    %c0_i32_0 = arith.constant 0 : i32
    %c0_i32_1 = arith.constant 0 : i32
    return %c0_i32, %c0_i32_0 : i32, i32
  }
  func.func @transform_2(%arg0: i32) -> (i32, i32) {
    %c0_i32 = arith.constant 0 : i32
    %c0_i32_0 = arith.constant 0 : i32
    %c0_i32_1 = arith.constant 0 : i32
    return %c0_i32, %c0_i32_0 : i32, i32
  }
  func.func @transform_3(%arg0: i32) -> (i32, i32) {
    %c0_i32 = arith.constant 0 : i32
    %c0_i32_0 = arith.constant 0 : i32
    %c0_i32_1 = arith.constant 0 : i32
    return %c0_i32, %c0_i32_0 : i32, i32
  }
  func.func @transform_4(%arg0: i32) -> (i32, i32) {
    %c0_i32 = arith.constant 0 : i32
    %c0_i32_0 = arith.constant 0 : i32
    return %arg0, %c0_i32 : i32, i32
  }
}

</mosaic_0001>

<llo_original>
// kernel: tpu_custom_call.1
$region0: #{tpu_custom_call.1}
  #allocation0 [shape = 'u32[]', space=smem, size = 0x4, offset = 0x4, fixed_abs, tag = 'smem constant byte address 0x4 - core index']
  #allocation1 [shape = 'u32[72,128]{1,0:T(1,128)}', space=vmem, size = 0x9000, scoped, tag = 'internal scratch']
  %s0 = inlined_call_operand.vmem [shape: s32[2,8], index: 0, kind: input, shape index: {}]
  %s1 = inlined_call_operand.vmem [shape: bf16[50,32], index: 1, kind: input, shape index: {}]
  %s2 = inlined_call_operand.vmem [shape: bf16[32,8], index: 2, kind: input, shape index: {}]
  %s3 = inlined_call_operand.vmem [shape: f32[1,8], index: 3, kind: input, shape index: {}]
  %s4 = inlined_call_operand.hbm [shape: f32[2,8], index: 4, kind: output, shape index: {}]
  %s5 = sld [smem:[#allocation0]]
  $region26: #{tpu_custom_call.1} parent=0
    _
  %s7 = ssub.s32 1, %s5
  %s8 = scalar_select 0, %s7, %s5
  $region1: #{tpu_custom_call.1} parent=0
    #allocation2 [shape = 'u8[1024]{0}', space=vmem, size = 0x400, scoped, tag = 'output window, operand 0, single buffered']
    #allocation3 [shape = 's32[1]{0}', space=sflag, size = 0x4, scoped, tag = 'scoped memory for tpu_custom_call.1']
    %9 = vsyncpa [#allocation3], 0
    // Predicated region
    $region2: #{tpu_custom_call.1} parent=1 // pred_check
      _
    $region3: #{tpu_custom_call.1} parent=1 // pred_check_branch
      %11 = sbr.rel (0) target = $region5
    $region4: #{tpu_custom_call.1} parent=1 // pred_region
      _
    $region5: #{tpu_custom_call.1} parent=1 // pred_fallthru
      _
    // Predicated region
    $region6: #{tpu_custom_call.1} parent=1 // pred_check
      _
    $region7: #{tpu_custom_call.1} parent=1 // pred_check_branch
      %13 = sbr.rel (0) target = $region9
    $region8: #{tpu_custom_call.1} parent=1 // pred_region
      _
    $region9: #{tpu_custom_call.1} parent=1 // pred_fallthru
      _
    // Predicated region
    $region10: #{tpu_custom_call.1} parent=1 // pred_check
      _
    $region11: #{tpu_custom_call.1} parent=1 // pred_check_branch
      %15 = sbr.rel (0) target = $region13
    $region12: #{tpu_custom_call.1} parent=1 // pred_region
      _
    $region13: #{tpu_custom_call.1} parent=1 // pred_fallthru
      _
    // Predicated region
    $region14: #{tpu_custom_call.1} parent=1 // pred_check
      _
    $region15: #{tpu_custom_call.1} parent=1 // pred_check_branch
      %17 = sbr.rel (0) target = $region17
    $region16: #{tpu_custom_call.1} parent=1 // pred_region
      _
    $region17: #{tpu_custom_call.1} parent=1 // pred_fallthru
      _
    %v19 = vld [vmem:[%s0] sm:$0x3]
    %v20 = vlaneseq
    %v21 = vand.u32 %v20, 127
    %22 = vset.pattern.permute.xlu0 0
    %23 = vperm.xlu0 %22, %v19
    %v24 = vpop.permute.xlu0 %23
    %vm25 = vcmp.eq.s32.totalorder %v24, %v21
    %v26 = vsel %vm25, 1, 0
    %v27 = vcvt.s32.f32 %v26
    %v28 = vadd.f32 %v27, 0.0
    %29 = vset.pattern.permute.xlu0 1
    %30 = vperm.xlu0 %29, %v19
    %v31 = vpop.permute.xlu0 %30
    %vm32 = vcmp.eq.s32.totalorder %v31, %v21
    %v33 = vsel %vm32, 1, 0
    %v34 = vcvt.s32.f32 %v33
    %v35 = vadd.f32 %v28, %v34
    %36 = vset.pattern.permute.xlu0 2
    %37 = vperm.xlu0 %36, %v19
    %v38 = vpop.permute.xlu0 %37
    %vm39 = vcmp.eq.s32.totalorder %v38, %v21
    %v40 = vsel %vm39, 1, 0
    %v41 = vcvt.s32.f32 %v40
    %v42 = vadd.f32 %v35, %v41
    %43 = vset.pattern.permute.xlu0 3
    %44 = vperm.xlu0 %43, %v19
    %v45 = vpop.permute.xlu0 %44
    %vm46 = vcmp.eq.s32.totalorder %v45, %v21
    %v47 = vsel %vm46, 1, 0
    %v48 = vcvt.s32.f32 %v47
    %v49 = vadd.f32 %v42, %v48
    %50 = vset.pattern.permute.xlu0 4
    %51 = vperm.xlu0 %50, %v19
    %v52 = vpop.permute.xlu0 %51
    %vm53 = vcmp.eq.s32.totalorder %v52, %v21
    %v54 = vsel %vm53, 1, 0
    %v55 = vcvt.s32.f32 %v54
    %v56 = vadd.f32 %v49, %v55
    %57 = vset.pattern.permute.xlu0 5
    %58 = vperm.xlu0 %57, %v19
    %v59 = vpop.permute.xlu0 %58
    %vm60 = vcmp.eq.s32.totalorder %v59, %v21
    %v61 = vsel %vm60, 1, 0
    %v62 = vcvt.s32.f32 %v61
    %v63 = vadd.f32 %v56, %v62
    %64 = vset.pattern.permute.xlu0 6
    %65 = vperm.xlu0 %64, %v19
    %v66 = vpop.permute.xlu0 %65
    %vm67 = vcmp.eq.s32.totalorder %v66, %v21
    %v68 = vsel %vm67, 1, 0
    %v69 = vcvt.s32.f32 %v68
    %v70 = vadd.f32 %v63, %v69
    %71 = vset.pattern.permute.xlu0 7
    %72 = vperm.xlu0 %71, %v19
    %v73 = vpop.permute.xlu0 %72
    %vm74 = vcmp.eq.s32.totalorder %v73, %v21
    %v75 = vsel %vm74, 1, 0
    %v76 = vcvt.s32.f32 %v75
    %v77 = vadd.f32 %v70, %v76
    %v78 = vmul.f32 %v77, 0.125
    %v79 = vpack.c.bf16 %v78, %v78
    %v80 = vld [vmem:[%s1] sm:$0xf]
    %v81 = vld [vmem:[%s1 + $0x4] sm:$0xf]
    %v82 = vld [vmem:[%s1 + $0x8] sm:$0xf]
    %v83 = vld [vmem:[%s1 + $0xc] sm:$0xf]
    %v84 = vld [vmem:[%s1 + $0x10] sm:$0xf]
    %v85 = vld [vmem:[%s1 + $0x14] sm:$0xf]
    %v86 = vld [vmem:[%s1 + $0x18] sm:$0x1]
    %v94 = vunpack.c.l.b16 %v80
    %v95 = vunpack.c.l.b16 %v81
    %v96 = vunpack.c.l.b16 %v82
    %v97 = vunpack.c.l.b16 %v83
    %v98 = vunpack.c.l.b16 %v84
    %v99 = vunpack.c.l.b16 %v85
    %v100 = vunpack.c.l.b16 %v86
    %v101 = vpack.c.b16 %v95, %v94
    %v102 = vpack.c.b16 %v97, %v96
    %v103 = vpack.c.b16 %v99, %v98
    %v104 = vpack.c.b16 %v100, %v100
    %vm108 = vcmask 408576
    %v110 = vsel %vm108, %v79, 0
    %vm112 = vcmask 1040384
    %v114 = vsel %vm112, %v104, 0
    %116 = vmatpush.bf16.msra.mxu0 0
    %117 = vmatpush.bf16.msra.mxu0 0
    %118 = vmatpush.bf16.msra.mxu0 0
    %119 = vmatpush.bf16.msra.mxu0 0
    %120 = vmatpush.bf16.msra.mxu0 %v114
    %121 = vmatpush.bf16.msra.mxu0 %v103
    %122 = vmatpush.bf16.msra.mxu0 %v102
    %123 = vmatpush.bf16.msra.mxu0 %v101
    %124 = vmatmul.bf16.gmra.mxu0 %v110
    %v125 = vpop.f32.mrf.mxu0
    %v126 = vadd.f32 0.0, %v125
    %v127 = vpop.f32.mrf.mxu0
    %128 = vdwg.mxu0
    %v129 = vpack.c.bf16 %v126, %v126
    %v130 = vld [vmem:[%s2] sm:$0xf]
    %v131 = vld [vmem:[%s2 + $0x4] sm:$0xf]
    %v132 = vld [vmem:[%s2 + $0x8] sm:$0xf]
    %v133 = vld [vmem:[%s2 + $0xc] sm:$0xf]
    %v134 = vld [vmem:[%s3] sm:$0x1]
    %v136 = vperm.slane %v134, 0
    %v142 = vunpack.c.l.b16 %v130
    %v143 = vunpack.c.l.b16 %v131
    %v144 = vunpack.c.l.b16 %v132
    %v145 = vunpack.c.l.b16 %v133
    %v146 = vpack.c.b16 %v143, %v142
    %v147 = vpack.c.b16 %v145, %v144
    %vm150 = vcmask 261120
    %v152 = vsel %vm150, %v129, 0
    %154 = vmatpush.bf16.msra.mxu0 0
    %155 = vmatpush.bf16.msra.mxu0 0
    %156 = vmatpush.bf16.msra.mxu0 0
    %157 = vmatpush.bf16.msra.mxu0 0
    %158 = vmatpush.bf16.msra.mxu0 0
    %159 = vmatpush.bf16.msra.mxu0 0
    %160 = vmatpush.bf16.msra.mxu0 %v147
    %161 = vmatpush.bf16.msra.mxu0 %v146
    %162 = vmatmul.bf16.gmra.mxu0 %v152
    %v163 = vpop.f32.mrf.mxu0
    %v164 = vadd.f32 %v136, %v163
    %v165 = vpop.f32.mrf.mxu0
    %166 = vdwg.mxu0
    %vm167 = vcmask 58368
    %v168 = vsel %vm167, %v164, -inf
    %169 = vmax.xlane.f32.xlu0 %v168
    %v170 = vpop.xlane.xlu0 %169
    %v171 = vsub.f32 %v164, %v170
    %v172 = vmul.f32 %v171, 1.442695
    %v173 = vpow.pop %v172
    %v174 = vsel %vm167, %v173, 0.0
    %175 = vadd.xlane.f32.xlu0 %v174
    %v176 = vpop.xlane.xlu0 %175
    %v177 = vrcp.pop %v176
    %v178 = vmul.f32 %v176, %v177
    %v179 = vsub.f32 1.0, %v178
    %v180 = vmul.f32 %v177, %v179
    %v181 = vadd.f32 %v177, %v180
    %vm182 = vweird.f32 %v176
    %vm183 = vweird.f32 %v177
    %vm184 = vmor %vm182, %vm183
    %v185 = vsel %vm184, %v177, %v181
    %v186 = vand.u32 2147483647, %v176
    %vm187 = vcmp.eq.f32.partialorder %v186, 8.507059e+37
    %v188 = vand.u32 %v176, 2147483648
    %v189 = vor.u32 1.1754944e-38, %v188
    %v190 = vsel %vm187, %v189, %v185
    %v191 = vmul.f32 %v173, %v190
    %192 = vst.msk [vmem:[#allocation2] sm:$0x3] %vm167, %v191
    // Predicated region
    $region18: #{tpu_custom_call.1} parent=1 // pred_check
      _
    $region19: #{tpu_custom_call.1} parent=1 // pred_check_branch
      %194 = sbr.rel (0) target = $region21
    $region20: #{tpu_custom_call.1} parent=1 // pred_region
      %196 = vsyncadd [#allocation3], 0
      %s198 = sshll.u32 [#allocation2], 4
      %s199 = int_to_ptr.vmem [resolvable:$true] %s198
      %s200 = sshll.u32 %s4, 4
      %s201 = int_to_ptr.hbm [resolvable:$true] %s200
      %203 = dma.vmem_to_hbm [thread:$0]  %s199, 32, %s201, [#allocation3]
    $region21: #{tpu_custom_call.1} parent=1 // pred_fallthru
      _
    // Predicated region
    $region22: #{tpu_custom_call.1} parent=1 // pred_check
      _
    $region23: #{tpu_custom_call.1} parent=1 // pred_check_branch
      %205 = sbr.rel (0) target = $region25
    $region24: #{tpu_custom_call.1} parent=1 // pred_region
      %207 = dma.done [#allocation3], 32
    $region25: #{tpu_custom_call.1} parent=1 // pred_fallthru
      _
    %208 = vsyncpa [#allocation3], 1

</llo_original>
